<compile_context>
chip_gen: v7x
topology: tpu7x:2x2x1
jax: 0.10.0
libtpu: 0.0.40
codegen_flags: <defaults>
</compile_context>

<pallas_src>
import functools
import math
import numpy as np
import jax
import jax.numpy as jnp
from jax.experimental import pallas as pl
from jax.experimental.pallas import tpu as pltpu


def _make_bce_counts_kernel(n_rows: int):
    inv_n = 1.0 / float(n_rows)
    n_f = float(n_rows)

    def kernel(x_ref, ce_ref, counts_ref, acc_ref):
        pid = pl.program_id(0)

        @pl.when(pid == 0)
        def _init():
            acc_ref[...] = jnp.zeros_like(acc_ref)

        x = x_ref[...]                  # (3, tm, 128) f32, batch is (sublane, lane)-dense
        p = x[0]                        # predicted prob          (tm, 128)
        t = x[1]                        # label_true[:, 0]        (dataset col 108)
        s = x[2]                        # data[:, 107]            (dataset col 107)

        # F.binary_cross_entropy, reduction='mean'; PyTorch clamps log outputs at -100.
        # (log(1-p) kept for fidelity to torch; log1p(-p) would be more accurate.)
        log_p = jnp.maximum(jnp.log(p), -100.0)
        log_1mp = jnp.maximum(jnp.log(1.0 - p), -100.0)
        per_elem = -(t * log_p + (1.0 - t) * log_1mp)

        # Per-tile sublane reductions only; keep partials lane-resident so the
        # expensive cross-lane reduce happens exactly once (in the finalize step).
        partial = jnp.concatenate(
            [jnp.sum(per_elem, axis=0, keepdims=True),   # sum(bce_per_elem)
             jnp.sum(t, axis=0, keepdims=True),          # sum(t)
             jnp.sum(s, axis=0, keepdims=True),          # sum(s)
             jnp.sum(t * s, axis=0, keepdims=True)],     # sum(t*s)  (== DP count)
            axis=0)                                      # (4, 128)
        acc_ref[...] += partial

        @pl.when(pid == pl.num_programs(0) - 1)
        def _finalize():
            totals = jnp.sum(acc_ref[...], axis=-1, keepdims=True)   # (4, 1)
            sum_ce = totals[0, 0]
            sum_t = totals[1, 0]
            sum_s = totals[2, 0]
            dp = totals[3, 0]
            ce_ref[0, 0] = sum_ce * inv_n
            counts_ref[0] = dp.astype(jnp.int32)                           # DP: t==1 & s==1
            counts_ref[1] = (sum_t - dp).astype(jnp.int32)                 # DN: t==1 & s==0
            counts_ref[2] = (sum_s - dp).astype(jnp.int32)                 # PP: t==0 & s==1
            counts_ref[3] = (n_f - sum_t - sum_s + dp).astype(jnp.int32)   # PN: t==0 & s==0

    return kernel


@functools.partial(jax.jit, static_argnames=("max_rows_per_tile",))
def bce_and_group_counts(label_pred, label_true, data, *, max_rows_per_tile=1024):
    """BCE(mean) + fairness-group counts in one Pallas kernel."""
    n = data.shape[0]

    pred = jnp.reshape(label_pred.astype(jnp.float32), (n,))
    targ = label_true[:, 0].astype(jnp.float32)
    sex = data[:, 107].astype(jnp.float32)

    # Batch → (rows, 128): lanes AND sublanes fully dense.  Zero padding contributes
    # exactly 0 to every partial sum (bce(p=0, t=0) = 0, t = s = 0).
    n_pad128 = ((n + 127) // 128) * 128
    m = n_pad128 // 128
    if m <= max_rows_per_tile:
        tm = m                                   # full extent: no mult-of-8 requirement
        m_pad = m
    else:
        tm = max_rows_per_tile                   # multiple of 8 → (8, 128)-aligned tiles
        m_pad = ((m + tm - 1) // tm) * tm
    n_pad = m_pad * 128

    def pack(v):
        return jnp.pad(v, (0, n_pad - n)).reshape(1, m_pad, 128)

    stacked = jnp.concatenate([pack(pred), pack(targ), pack(sex)], axis=0)  # (3, m_pad, 128)

    grid = (m_pad // tm,)
    # TODO(synk): for very large N on v7x, add a leading "parallel" batch-split axis
    # (2 TCs) with per-core partials; current single-axis reduction runs on one TC.
    ce, counts = pl.pallas_call(
        _make_bce_counts_kernel(n),
        out_shape=(jax.ShapeDtypeStruct((1, 1), jnp.float32),
                   jax.ShapeDtypeStruct((4,), jnp.int32)),
        grid=grid,
        in_specs=[pl.BlockSpec((3, tm, 128), lambda i: (0, i, 0))],
        out_specs=(pl.BlockSpec((1, 1), lambda i: (0, 0),
                                memory_space=pltpu.MemorySpace.SMEM),
                   pl.BlockSpec((4,), lambda i: (0,),
                                memory_space=pltpu.MemorySpace.SMEM)),
        scratch_shapes=[pltpu.VMEM((4, 128), jnp.float32)],
        compiler_params=pltpu.CompilerParams(dimension_semantics=("arbitrary",)),
    )(stacked)
    return ce, counts


# ---- host-side re-sampling helpers (mirror torch logic exactly) --------------------
def _duplicating(batch_sorted, expected_value):
    n = len(batch_sorted)
    need = expected_value - n
    if need < n:
        duplicate = batch_sorted[0:need, :]
        return np.concatenate((batch_sorted, duplicate), axis=0)
    elif need > n:
        circle = math.floor(need / n)
        duplicate = batch_sorted
        for _ in range(circle):
            duplicate = np.concatenate((duplicate, batch_sorted), axis=0)
        rest = batch_sorted[0:need - circle * n, :]
        return np.concatenate((rest, duplicate), axis=0)
    # TODO(synk): need == len is undefined (UnboundLocalError) in the reference; surface it.
    raise ValueError("undefined case in reference Duplicating (need_value == len)")


def _skipping(batch_sorted, expected_value):
    drop = len(batch_sorted) - expected_value
    if drop < 0:
        raise ValueError("skipping value too large!!")
    return batch_sorted[drop:, :]


def loss_function_p_sampling(label_pred, label_true, data):
    n = data.shape[0]

    # Pallas kernel: BCE loss + group-count reductions.
    ce_dev, counts_dev = bce_and_group_counts(label_pred, label_true, data)

    # Single blocking host transfer for everything the host re-sampling step needs.
    ce_h, counts_h, pred_h, true_h, data_h = jax.device_get(
        (ce_dev, counts_dev, label_pred, label_true, data))
    ce_loss = float(np.asarray(ce_h)[0, 0])
    n_dp, n_dn, n_pp, n_pn = (int(c) for c in np.asarray(counts_h))

    sex_list = [n_dp + n_dn, n_pp + n_pn]
    income_list = [n_dp + n_pp, n_dn + n_pn]
    expected = []
    for i in range(2):
        for j in range(2):
            expected.append(math.ceil(sex_list[i] * income_list[j] / n))

    # TODO(synk): the per-group sort / duplicate / skip produces a data-dependent output
    # shape; there is no static-shape Pallas equivalent, so this re-sampling runs on host.
    dataset = np.concatenate(
        (np.asarray(data_h, dtype=np.float32),
         np.asarray(true_h, dtype=np.float32),
         np.asarray(pred_h, dtype=np.float32)), axis=1)                   # (N, 111)
    inc = dataset[:, 108]
    sex = dataset[:, 107]
    dp = dataset[(inc == 1) & (sex == 1)]
    pp = dataset[(inc == 0) & (sex == 1)]
    dn = dataset[(inc == 1) & (sex == 0)]
    pn = dataset[(inc == 0) & (sex == 0)]

    dp_sorted = dp[np.argsort(dp[:, 110], kind="stable")]       # ascending
    pn_sorted = pn[np.argsort(-pn[:, 110], kind="stable")]      # descending
    dn_sorted = dn[np.argsort(-dn[:, 110], kind="stable")]      # descending
    pp_sorted = pp[np.argsort(pp[:, 110], kind="stable")]       # ascending

    dp_new = _duplicating(dp_sorted, expected[0])
    dn_new = _skipping(dn_sorted, expected[1])
    pp_new = _skipping(pp_sorted, expected[2])
    pn_new = _duplicating(pn_sorted, expected[3])

    new_train_set = np.concatenate((dp_new, dn_new, pp_new, pn_new), axis=0)[:, 0:110]
    return ce_loss, new_train_set


if __name__ == "__main__":
    key = jax.random.PRNGKey(0)
    N, D = 64, 108
    k1, k2 = jax.random.split(key, 2)

    data = jax.random.uniform(k1, (N, D), dtype=jnp.float32)

    # group assignment: DP=10 (inc=1,sex=1), DN=22 (inc=1,sex=0), PP=20 (inc=0,sex=1), PN=12 (0,0)
    income = np.zeros(N, np.float32)
    sex = np.zeros(N, np.float32)
    income[:10] = 1.0;  sex[:10] = 1.0
    income[10:32] = 1.0; sex[10:32] = 0.0
    income[32:52] = 0.0; sex[32:52] = 1.0
    data = data.at[:, 107].set(jnp.asarray(sex))

    label_true = jnp.stack([jnp.asarray(income), 1.0 - jnp.asarray(income)], axis=1)  # (N, 2)
    label_pred = jax.random.uniform(k2, (N, 1), dtype=jnp.float32, minval=0.01, maxval=0.99)

    # block on the device results before the host-side resampling consumes them
    ce_dev, counts_dev = bce_and_group_counts(label_pred, label_true, data)
    jax.block_until_ready((ce_dev, counts_dev))

    ce, new_train_set = loss_function_p_sampling(label_pred, label_true, data)

    # host reference checks
    p_h = np.asarray(label_pred).reshape(-1)
    t_h = income
    ref_ce = float(np.mean(-(t_h * np.maximum(np.log(p_h), -100.0)
                             + (1.0 - t_h) * np.maximum(np.log(1.0 - p_h), -100.0))))
    counts_h = np.asarray(jax.device_get(counts_dev))
    assert np.isfinite(ce)
    assert abs(ce - ref_ce) < 1e-5, (ce, ref_ce)
    assert list(counts_h) == [10, 22, 20, 12], counts_h
    assert new_train_set.shape == (64, 110), new_train_set.shape
    print("KERNEL_OK")
</pallas_src>

<mosaic_0001>
module attributes {stable_mosaic.version = 11 : i64} {
  func.func @kernel(%arg0: i32, %arg1: memref<3x1x128xf32, #tpu.memory_space<vmem>>, %arg2: memref<1x1xf32, #tpu.memory_space<smem>>, %arg3: memref<4xi32, #tpu.memory_space<smem>>, %arg4: memref<4x128xf32, #tpu.memory_space<vmem>>) attributes {dimension_semantics = [#tpu.dimension_semantics<arbitrary>], iteration_bounds = array<i64: 1>, scalar_prefetch = 0 : i64, scratch_operands = 1 : i64, tpu.core_type = #tpu.core_type<tc>, window_params = [{transform_indices = @transform_0, window_bounds = array<i64: 3, 1, 128>}, {transform_indices = @transform_1, window_bounds = array<i64: 1, 1>}, {transform_indices = @transform_2, window_bounds = array<i64: 4>}]} {
    %c0_i32 = arith.constant 0 : i32
    %0 = arith.cmpi eq, %arg0, %c0_i32 : i32
    %1 = arith.extui %0 : i1 to i32
    %c0_i32_0 = arith.constant 0 : i32
    %2 = arith.cmpi ne, %1, %c0_i32_0 : i32
    scf.if %2 {
      %cst_17 = arith.constant 0.000000e+00 : f32
      %41 = vector.broadcast %cst_17 : f32 to vector<4x128xf32>
      %c0_18 = arith.constant 0 : index
      %c0_19 = arith.constant 0 : index
      %42 = vector.load %arg4[%c0_18, %c0_19] : memref<4x128xf32, #tpu.memory_space<vmem>>, vector<4x128xf32>
      tpu.vector_store %arg4[%c0_18, %c0_19], %41 {strides = array<i32>} : memref<4x128xf32, #tpu.memory_space<vmem>>, vector<4x128xf32>,
    } else {
    }
    %c0 = arith.constant 0 : index
    %c0_1 = arith.constant 0 : index
    %c0_2 = arith.constant 0 : index
    %3 = vector.load %arg1[%c0, %c0_1, %c0_2] : memref<3x1x128xf32, #tpu.memory_space<vmem>>, vector<3x1x128xf32>
    %4 = vector.extract_strided_slice %3 {offsets = [0, 0, 0], sizes = [1, 1, 128], strides = [1, 1, 1]} : vector<3x1x128xf32> to vector<1x1x128xf32>
    %5 = vector.shape_cast %4 : vector<1x1x128xf32> to vector<1x128xf32>
    %6 = vector.extract_strided_slice %3 {offsets = [1, 0, 0], sizes = [1, 1, 128], strides = [1, 1, 1]} : vector<3x1x128xf32> to vector<1x1x128xf32>
    %7 = vector.shape_cast %6 : vector<1x1x128xf32> to vector<1x128xf32>
    %8 = vector.extract_strided_slice %3 {offsets = [2, 0, 0], sizes = [1, 1, 128], strides = [1, 1, 1]} : vector<3x1x128xf32> to vector<1x1x128xf32>
    %9 = vector.shape_cast %8 : vector<1x1x128xf32> to vector<1x128xf32>
    %10 = math.log %5 : vector<1x128xf32>
    %cst = arith.constant -1.000000e+02 : f32
    %11 = vector.broadcast %cst : f32 to vector<1x128xf32>
    %12 = arith.maximumf %10, %11 : vector<1x128xf32>
    %cst_3 = arith.constant 1.000000e+00 : f32
    %13 = vector.broadcast %cst_3 : f32 to vector<1x128xf32>
    %14 = arith.subf %13, %5 : vector<1x128xf32>
    %15 = math.log %14 : vector<1x128xf32>
    %cst_4 = arith.constant -1.000000e+02 : f32
    %16 = vector.broadcast %cst_4 : f32 to vector<1x128xf32>
    %17 = arith.maximumf %15, %16 : vector<1x128xf32>
    %18 = arith.mulf %7, %12 : vector<1x128xf32>
    %cst_5 = arith.constant 1.000000e+00 : f32
    %19 = vector.broadcast %cst_5 : f32 to vector<1x128xf32>
    %20 = arith.subf %19, %7 : vector<1x128xf32>
    %21 = arith.mulf %20, %17 : vector<1x128xf32>
    %22 = arith.addf %18, %21 : vector<1x128xf32>
    %cst_6 = arith.constant 0.000000e+00 : f32
    %23 = vector.broadcast %cst_6 : f32 to vector<1x128xf32>
    %24 = arith.subf %23, %22 : vector<1x128xf32>
    %cst_7 = arith.constant dense<0.000000e+00> : vector<128xf32>
    %25 = vector.multi_reduction <add>, %24, %cst_7 [0] : vector<1x128xf32> to vector<128xf32>
    %26 = vector.shape_cast %25 : vector<128xf32> to vector<1x128xf32>
    %cst_8 = arith.constant dense<0.000000e+00> : vector<128xf32>
    %27 = vector.multi_reduction <add>, %7, %cst_8 [0] : vector<1x128xf32> to vector<128xf32>
    %28 = vector.shape_cast %27 : vector<128xf32> to vector<1x128xf32>
    %cst_9 = arith.constant dense<0.000000e+00> : vector<128xf32>
    %29 = vector.multi_reduction <add>, %9, %cst_9 [0] : vector<1x128xf32> to vector<128xf32>
    %30 = vector.shape_cast %29 : vector<128xf32> to vector<1x128xf32>
    %31 = arith.mulf %7, %9 : vector<1x128xf32>
    %cst_10 = arith.constant dense<0.000000e+00> : vector<128xf32>
    %32 = vector.multi_reduction <add>, %31, %cst_10 [0] : vector<1x128xf32> to vector<128xf32>
    %33 = vector.shape_cast %32 : vector<128xf32> to vector<1x128xf32>
    %34 = tpu.concatenate %26, %28, %30, %33 in 0 : vector<1x128xf32>, vector<1x128xf32>, vector<1x128xf32>, vector<1x128xf32> -> vector<4x128xf32>
    %c0_11 = arith.constant 0 : index
    %c0_12 = arith.constant 0 : index
    %35 = vector.load %arg4[%c0_11, %c0_12] : memref<4x128xf32, #tpu.memory_space<vmem>>, vector<4x128xf32>
    %36 = arith.addf %35, %34 : vector<4x128xf32>
    %c0_13 = arith.constant 0 : index
    %c0_14 = arith.constant 0 : index
    %37 = vector.load %arg4[%c0_13, %c0_14] : memref<4x128xf32, #tpu.memory_space<vmem>>, vector<4x128xf32>
    tpu.vector_store %arg4[%c0_13, %c0_14], %36 {strides = array<i32>} : memref<4x128xf32, #tpu.memory_space<vmem>>, vector<4x128xf32>,
    %c0_i32_15 = arith.constant 0 : i32
    %38 = arith.cmpi eq, %arg0, %c0_i32_15 : i32
    %39 = arith.extui %38 : i1 to i32
    %c0_i32_16 = arith.constant 0 : i32
    %40 = arith.cmpi ne, %39, %c0_i32_16 : i32
    scf.if %40 {
      %c0_17 = arith.constant 0 : index
      %c0_18 = arith.constant 0 : index
      %41 = vector.load %arg4[%c0_17, %c0_18] : memref<4x128xf32, #tpu.memory_space<vmem>>, vector<4x128xf32>
      %cst_19 = arith.constant dense<0.000000e+00> : vector<4xf32>
      %42 = vector.multi_reduction <add>, %41, %cst_19 [1] : vector<4x128xf32> to vector<4xf32>
      %43 = vector.shape_cast %42 : vector<4xf32> to vector<4x1xf32>
      %44 = vector.extract_strided_slice %43 {offsets = [0, 0], sizes = [1, 1], strides = [1, 1]} : vector<4x1xf32> to vector<1x1xf32>
      %45 = vector.extract %44[0, 0] : f32 from vector<1x1xf32>
      %46 = vector.extract_strided_slice %43 {offsets = [1, 0], sizes = [1, 1], strides = [1, 1]} : vector<4x1xf32> to vector<1x1xf32>
      %47 = vector.extract %46[0, 0] : f32 from vector<1x1xf32>
      %48 = vector.extract_strided_slice %43 {offsets = [2, 0], sizes = [1, 1], strides = [1, 1]} : vector<4x1xf32> to vector<1x1xf32>
      %49 = vector.extract %48[0, 0] : f32 from vector<1x1xf32>
      %50 = vector.extract_strided_slice %43 {offsets = [3, 0], sizes = [1, 1], strides = [1, 1]} : vector<4x1xf32> to vector<1x1xf32>
      %51 = vector.extract %50[0, 0] : f32 from vector<1x1xf32>
      %cst_20 = arith.constant 1.562500e-02 : f32
      %52 = arith.mulf %45, %cst_20 : f32
      %c0_21 = arith.constant 0 : index
      %c0_22 = arith.constant 0 : index
      %53 = memref.load %arg2[%c0_21, %c0_22] : memref<1x1xf32, #tpu.memory_space<smem>>
      memref.store %52, %arg2[%c0_21, %c0_22] : memref<1x1xf32, #tpu.memory_space<smem>>
      %54 = arith.fptosi %51 : f32 to i32
      %c0_23 = arith.constant 0 : index
      %55 = memref.load %arg3[%c0_23] : memref<4xi32, #tpu.memory_space<smem>>
      memref.store %54, %arg3[%c0_23] : memref<4xi32, #tpu.memory_space<smem>>
      %56 = arith.subf %47, %51 : f32
      %57 = arith.fptosi %56 : f32 to i32
      %c1 = arith.constant 1 : index
      %58 = memref.load %arg3[%c1] : memref<4xi32, #tpu.memory_space<smem>>
      memref.store %57, %arg3[%c1] : memref<4xi32, #tpu.memory_space<smem>>
      %59 = arith.subf %49, %51 : f32
      %60 = arith.fptosi %59 : f32 to i32
      %c2 = arith.constant 2 : index
      %61 = memref.load %arg3[%c2] : memref<4xi32, #tpu.memory_space<smem>>
      memref.store %60, %arg3[%c2] : memref<4xi32, #tpu.memory_space<smem>>
      %cst_24 = arith.constant 6.400000e+01 : f32
      %62 = arith.subf %cst_24, %47 : f32
      %63 = arith.subf %62, %49 : f32
      %64 = arith.addf %63, %51 : f32
      %65 = arith.fptosi %64 : f32 to i32
      %c3 = arith.constant 3 : index
      %66 = memref.load %arg3[%c3] : memref<4xi32, #tpu.memory_space<smem>>
      memref.store %65, %arg3[%c3] : memref<4xi32, #tpu.memory_space<smem>>
    } else {
    }
    return
  }
  func.func @transform_0(%arg0: i32) -> (i32, i32, i32) {
    %c0_i32 = arith.constant 0 : i32
    %c0_i32_0 = arith.constant 0 : i32
    %c0_i32_1 = arith.constant 0 : i32
    return %c0_i32, %arg0, %c0_i32_0 : i32, i32, i32
  }
  func.func @transform_1(%arg0: i32) -> (i32, i32) {
    %c0_i32 = arith.constant 0 : i32
    %c0_i32_0 = arith.constant 0 : i32
    %c0_i32_1 = arith.constant 0 : i32
    return %c0_i32, %c0_i32_0 : i32, i32
  }
  func.func @transform_2(%arg0: i32) -> i32 {
    %c0_i32 = arith.constant 0 : i32
    %c0_i32_0 = arith.constant 0 : i32
    return %c0_i32 : i32
  }
}

</mosaic_0001>

<llo_original>
// kernel: bce_and_group_counts.1
$region0: #{bce_and_group_counts.1}
  #allocation0 [shape = 'u32[]', space=smem, size = 0x4, offset = 0x4, fixed_abs, tag = 'smem constant byte address 0x4 - core index']
  #allocation1 [shape = 'u32[144,128]{1,0:T(1,128)}', space=vmem, size = 0x12000, scoped, tag = 'internal scratch']
  #allocation2 [shape = 'f32[4,128]{1,0:T(4,128)}', space=vmem, size = 0x800, scoped, tag = 'scratch operand']
  %s0 = inlined_call_operand.vmem [shape: f32[3,1,128], index: 0, kind: input, shape index: {}]
  %s1 = inlined_call_operand.hbm [shape: f32[1,1], index: 1, kind: output, shape index: {0}]
  %s2 = inlined_call_operand.hbm [shape: s32[4], index: 2, kind: output, shape index: {1}]
  %3 = xla_tuple %s1, %s2
  %s4 = sld [smem:[#allocation0]]
  $region30: #{bce_and_group_counts.1} parent=0
    _
  %s6 = ssub.s32 1, %s4
  %s7 = scalar_select 0, %s6, %s4
  $region1: #{bce_and_group_counts.1} parent=0
    #allocation3 [shape = 'u8[512]{0}', space=smem, size = 0x200, scoped, tag = 'output window, operand 0, single buffered']
    #allocation4 [shape = 's32[1]{0}', space=sflag, size = 0x4, scoped, tag = 'scoped memory for bce_and_group_counts.1']
    #allocation5 [shape = 'u8[512]{0}', space=smem, size = 0x200, scoped, tag = 'output window, operand 1, single buffered']
    #allocation6 [shape = 's32[1]{0}', space=sflag, size = 0x4, scoped, tag = 'scoped memory for bce_and_group_counts.1']
    %8 = vsyncpa [#allocation4], 0
    %9 = vsyncpa [#allocation6], 0
    // Predicated region
    $region2: #{bce_and_group_counts.1} parent=1 // pred_check
      _
    $region3: #{bce_and_group_counts.1} parent=1 // pred_check_branch
      %11 = sbr.rel (0) target = $region5
    $region4: #{bce_and_group_counts.1} parent=1 // pred_region
      _
    $region5: #{bce_and_group_counts.1} parent=1 // pred_fallthru
      _
    %p12 = scmp.eq.s32.totalorder 0, 0
    // Predicated region
    $region6: #{bce_and_group_counts.1} parent=1 // pred_check
      %p13 = pneg %p12
    $region7: #{bce_and_group_counts.1} parent=1 // pred_check_branch
      %15 = sbr.rel (%p13) target = $region9
    $region8: #{bce_and_group_counts.1} parent=1 // pred_region
      %16 = vst [vmem:[#allocation2] sm:$0xf] 0.0
    $region9: #{bce_and_group_counts.1} parent=1 // pred_fallthru
      _
    %v17 = vld [vmem:[%s0] sm:$0x1]
    %v18 = vld [vmem:[%s0 + $0x1] sm:$0x1]
    %v19 = vld [vmem:[%s0 + $0x2] sm:$0x1]
    %v20 = vlog2.pop %v17
    %v21 = vmul.f32 %v20, 0.6931472
    %v22 = vmax.f32 %v21, -100.0
    %v23 = vsub.f32 1.0, %v17
    %v24 = vlog2.pop %v23
    %v25 = vmul.f32 %v24, 0.6931472
    %v26 = vmax.f32 %v25, -100.0
    %v27 = vmul.f32 %v18, %v22
    %v28 = vsub.f32 1.0, %v18
    %v29 = vmul.f32 %v28, %v26
    %v30 = vadd.f32 %v27, %v29
    %v31 = vsub.f32 0.0, %v30
    %v32 = vadd.f32 %v31, 0.0
    %v33 = vadd.f32 %v18, 0.0
    %v34 = vadd.f32 %v19, 0.0
    %v35 = vmul.f32 %v18, %v19
    %v36 = vadd.f32 %v35, 0.0
    %v38 = vlaneseq
    %v39 = vshrl.u32 %v38, 7
    %v40 = vsub.s32 0, %v39
    %v41 = vrot.slane %v33, %v40
    %v44 = vlaneseq
    %v45 = vshrl.u32 %v44, 7
    %v46 = vsub.s32 0, %v45
    %v47 = vrot.slane %v34, %v46
    %v50 = vlaneseq
    %v51 = vshrl.u32 %v50, 7
    %v52 = vsub.s32 0, %v51
    %v53 = vrot.slane %v36, %v52
    %vm55 = vcmask 1040384
    %v56 = vsel %vm55, %v32, %v41
    %vm57 = vcmask 1041408
    %v58 = vsel %vm57, %v56, %v47
    %vm59 = vcmask 1042432
    %v60 = vsel %vm59, %v58, %v53
    %v61 = vld [vmem:[#allocation2] sm:$0xf]
    %v62 = vadd.f32 %v61, %v60
    %63 = vst [vmem:[#allocation2] sm:$0xf] %v62
    // Predicated region
    $region10: #{bce_and_group_counts.1} parent=1 // pred_check
      %p64 = pneg %p12
    $region11: #{bce_and_group_counts.1} parent=1 // pred_check_branch
      %66 = sbr.rel (%p64) target = $region13
    $region12: #{bce_and_group_counts.1} parent=1 // pred_region
      %v67 = vld [vmem:[#allocation2] sm:$0xf]
      %vm68 = vcmask 1043456
      %v69 = vsel %vm68, %v67, 0.0
      %70 = vadd.xlane.f32.xlu0 %v69
      %v71 = vpop.xlane.xlu0 %70
      %s72 = vtos %v71
      %v73 = vrot.slane %v71, 1
      %s74 = vtos %v73
      %v75 = vrot.slane %v71, 2
      %s76 = vtos %v75
      %v77 = vrot.slane %v71, 3
      %s78 = vtos %v77
      %s79 = smul.f32 %s72, 0.015625
      %s80 = scalar_lea.smem [#allocation3], 0
      %81 = sst [smem:[%s80]] %s79
      %s82 = scvt.f32.s32.to.zero.pseudo %s78
      %s83 = scalar_lea.smem [#allocation5], 0
      %84 = sst [smem:[%s83]] %s82
      %s85 = ssub.f32 %s74, %s78
      %s86 = scvt.f32.s32.to.zero.pseudo %s85
      %s87 = scalar_lea.smem [#allocation5], 1
      %88 = sst [smem:[%s87]] %s86
      %s89 = ssub.f32 %s76, %s78
      %s90 = scvt.f32.s32.to.zero.pseudo %s89
      %s91 = scalar_lea.smem [#allocation5], 2
      %92 = sst [smem:[%s91]] %s90
      %s93 = ssub.f32 64.0, %s74
      %s94 = ssub.f32 %s93, %s76
      %s95 = sadd.f32 %s94, %s78
      %s96 = scvt.f32.s32.to.zero.pseudo %s95
      %s97 = scalar_lea.smem [#allocation5], 3
      %98 = sst [smem:[%s97]] %s96
    $region13: #{bce_and_group_counts.1} parent=1 // pred_fallthru
      _
    // Predicated region
    $region14: #{bce_and_group_counts.1} parent=1 // pred_check
      _
    $region15: #{bce_and_group_counts.1} parent=1 // pred_check_branch
      %100 = sbr.rel (0) target = $region17
    $region16: #{bce_and_group_counts.1} parent=1 // pred_region
      %s102 = ssub.s32 16, 16
      %103 = vsyncadd [#allocation4], %s102
      %106 = dma.smem_to_hbm [#allocation3], 16, %s1, [#allocation4]
    $region17: #{bce_and_group_counts.1} parent=1 // pred_fallthru
      _
    // Predicated region
    $region18: #{bce_and_group_counts.1} parent=1 // pred_check
      _
    $region19: #{bce_and_group_counts.1} parent=1 // pred_check_branch
      %108 = sbr.rel (0) target = $region21
    $region20: #{bce_and_group_counts.1} parent=1 // pred_region
      %s110 = ssub.s32 16, 16
      %111 = vsyncadd [#allocation6], %s110
      %114 = dma.smem_to_hbm [#allocation5], 16, %s2, [#allocation6]
    $region21: #{bce_and_group_counts.1} parent=1 // pred_fallthru
      _
    // Predicated region
    $region22: #{bce_and_group_counts.1} parent=1 // pred_check
      _
    $region23: #{bce_and_group_counts.1} parent=1 // pred_check_branch
      %116 = sbr.rel (0) target = $region25
    $region24: #{bce_and_group_counts.1} parent=1 // pred_region
      %117 = dma.done [#allocation4], 16
    $region25: #{bce_and_group_counts.1} parent=1 // pred_fallthru
      _
    // Predicated region
    $region26: #{bce_and_group_counts.1} parent=1 // pred_check
      _
    $region27: #{bce_and_group_counts.1} parent=1 // pred_check_branch
      %119 = sbr.rel (0) target = $region29
    $region28: #{bce_and_group_counts.1} parent=1 // pred_region
      %120 = dma.done [#allocation6], 16
    $region29: #{bce_and_group_counts.1} parent=1 // pred_fallthru
      _
    %121 = sfence
    %122 = vsyncpa [#allocation4], 1
    %123 = vsyncpa [#allocation6], 1

</llo_original>
